<compile_context>
chip_gen: v5e
topology: v5e:2x2
jax: 0.10.0
libtpu: 0.0.40
codegen_flags: <defaults>
</compile_context>

<pallas_src>
import functools

import jax
import jax.numpy as jnp
from jax.experimental import pallas as pl
from jax.experimental.pallas import tpu as pltpu


def _round_up(x, m):
    return ((x + m - 1) // m) * m


def _softplus(x):
    # numerically stable softplus (exact; only applied to one (Bp, 128) slab)
    return jnp.maximum(x, 0.0) + jnp.log1p(jnp.exp(-jnp.abs(x)))


def _mish_exact(x):
    return x * jnp.tanh(_softplus(x))


def _mish_fast_ref(x):
    # mathematically identical to mish(x) = x*tanh(softplus(x)); used by the fallback reference
    t = jnp.exp(jnp.minimum(x, 20.0))
    q = (1.0 + t) * (1.0 + t)
    return x * (q - 1.0) / (q + 1.0)


def _mish_fast(x):
    # In-kernel Mish: 1 exp + 1 approx reciprocal (EUP) instead of exp+log1p+tanh.
    # Clamp at 20: mish(x) == x in f32 beyond that, and the formula still returns x.
    t = jnp.exp(jnp.minimum(x, 20.0))
    q = (1.0 + t) * (1.0 + t)
    return x * (q - 1.0) * pl.reciprocal(q + 1.0, approx=True)


# ---------------------------------------------------------------------------
# Kernel
# ---------------------------------------------------------------------------
def gmm_forward_kernel(xn_ref, p_ref, act_ref, *,
                       num_modes, min_std, kpad, ms_pad, nh_pad, d_pad, lg_off):
    f32, bf16 = jnp.float32, jnp.bfloat16
    M = num_modes
    Bp = xn_ref.shape[0]
    hoff = 2 * kpad               # column offset of the fused head block in pbuf
    brow = kpad + ms_pad          # sublane row holding the packed bias vector
    goff = kpad + d_pad           # lane offset of the gumbel block in xnbuf

    # ---- runtime inputs: one fused [x | eps | gumbel] slab ----
    xb = xn_ref[:, 0:kpad].astype(bf16)
    eps = xn_ref[:, kpad:kpad + d_pad]                       # (Bp, d_pad) f32
    gum_blk = xn_ref[:, goff:goff + 128]                     # (Bp, 128)  f32

    # ---- packed parameters: one fused bf16 slab ----
    b_all = p_ref[brow:brow + 1, :]                          # (1, cwidth) bias row
    kmode = p_ref[brow + 1:brow + 2, 0:ms_pad].astype(f32)   # (1, ms_pad) lane->mode map

    # ---- MLP trunk: bf16 MXU matmuls, f32 accumulation, fast Mish ----
    h1 = _mish_fast(jnp.dot(xb, p_ref[0:kpad, 0:kpad],
                            preferred_element_type=f32) + b_all[:, 0:kpad])
    h2 = _mish_fast(jnp.dot(h1.astype(bf16), p_ref[0:kpad, kpad:2 * kpad],
                            preferred_element_type=f32) + b_all[:, kpad:2 * kpad])

    # ---- Fused GMM heads: [means | scales_raw | logits packed into padding lanes] ----
    heads = (jnp.dot(h2.astype(bf16), p_ref[0:kpad, hoff:hoff + nh_pad],
                     preferred_element_type=f32) + b_all[:, hoff:hoff + nh_pad])

    # ---- Gumbel-max categorical sample (lane-aligned, masked; first-max == argmax) ----
    lg_blk = (lg_off // 128) * 128        # 128-aligned block containing the logit lanes
    loc = lg_off - lg_blk                 # logit offset within that block (static)
    logit_blk = heads[:, lg_blk:lg_blk + 128]
    jf = jax.lax.broadcasted_iota(jnp.int32, (Bp, 128), 1).astype(f32)
    valid = (jf >= float(loc)) & (jf < float(loc + M))
    pert = jnp.where(valid, logit_blk + gum_blk, -1e30)
    mmax = jnp.max(pert, axis=-1, keepdims=True)
    lmode = jnp.where(valid, jf - float(loc), float(M))
    first = jnp.min(jnp.where(pert >= mmax, lmode, float(M)),
                    axis=-1, keepdims=True)                  # (Bp, 1) chosen mode index

    # ---- Select chosen component: one-hot lane mask + bf16 MXU gather matmul ----
    wsel = (kmode == first).astype(f32)                      # (Bp, ms_pad) exact one-hot
    masked = (wsel * heads[:, 0:ms_pad]).astype(bf16)        # selected [means|scales_raw]
    sel = jnp.dot(masked, p_ref[kpad:kpad + ms_pad, 0:2 * d_pad],
                  preferred_element_type=f32)                # (Bp, 2*d_pad)

    sel_mean = sel[:, 0:d_pad]
    sel_scale = _softplus(sel[:, d_pad:2 * d_pad]) + min_std  # softplus commutes with one-hot select
    act_ref[...] = sel_mean + sel_scale * eps


# ---------------------------------------------------------------------------
# Host-side packing + wrapper
# ---------------------------------------------------------------------------
def pack_gmm_params(params, *, in_dim, hidden, num_modes, out_dim, min_std=1e-4):
    """Pack the 10 parameter arrays + selection constants into ONE bf16 buffer.

    Row layout (sublanes):
      [0, kpad)             : weight rows  (W1 | W2 | fused head block)
      [kpad, kpad+ms_pad)   : 0/1 gather matrix  (ms_pad, 2*d_pad)
      kpad+ms_pad           : packed bias row (b1 | b2 | fused head biases)
      kpad+ms_pad+1         : lane -> mixture-mode map (padding/logit lanes get M)
    """
    H, M, D = hidden, num_modes, out_dim
    MD = M * D
    assert M <= 128, "logit block assumed to fit one 128-lane block"
    kpad = _round_up(max(in_dim, H), 128)
    ms_pad = _round_up(2 * MD, 128)
    d_pad = _round_up(D, 128)
    pack_logits = (2 * MD + M) <= ms_pad
    if pack_logits:
        nh_pad, lg_off = ms_pad, 2 * MD          # logits live in the means/scales padding
    else:
        nh_pad, lg_off = ms_pad + _round_up(M, 128), ms_pad
    wtot = 2 * kpad + nh_pad
    hoff = 2 * kpad
    cwidth = max(wtot, 2 * d_pad)                # both are multiples of 128
    nrows = kpad + ms_pad + 8                    # multiple of 8 sublanes

    p = jnp.zeros((nrows, cwidth), jnp.float32)
    # weights
    p = p.at[:in_dim, 0:H].set(params["W1"])
    p = p.at[:H, kpad:kpad + H].set(params["W2"])
    p = p.at[:H, hoff:hoff + MD].set(params["Wm"])
    p = p.at[:H, hoff + MD:hoff + 2 * MD].set(params["Ws"])
    p = p.at[:H, hoff + lg_off:hoff + lg_off + M].set(params["Wl"])
    # 0/1 gather matrix: [means|scales_raw] lanes -> [mean | scale] output lanes
    r = jnp.arange(ms_pad)
    tgt = jnp.where(r < 2 * MD, (r // MD) * d_pad + (r % D), -1)
    gmat = (tgt[:, None] == jnp.arange(2 * d_pad)[None, :]).astype(jnp.float32)
    p = p.at[kpad:kpad + ms_pad, 0:2 * d_pad].set(gmat)
    # packed bias row
    brow = kpad + ms_pad
    p = p.at[brow:brow + 1, 0:H].set(params["b1"])
    p = p.at[brow:brow + 1, kpad:kpad + H].set(params["b2"])
    p = p.at[brow:brow + 1, hoff:hoff + MD].set(params["bm"])
    p = p.at[brow:brow + 1, hoff + MD:hoff + 2 * MD].set(params["bs"])
    p = p.at[brow:brow + 1, hoff + lg_off:hoff + lg_off + M].set(params["bl"])
    # lane -> mixture-mode map (padding and logit lanes get M = "never selected")
    kmode = jnp.where(r < 2 * MD, (r // D) % M, M).astype(jnp.float32)
    p = p.at[brow + 1, 0:ms_pad].set(kmode)

    return {
        "pbuf": p.astype(jnp.bfloat16),   # bf16 params (exact 0/1 gather + integer kmode)
        "num_modes": M, "out_dim": D, "min_std": float(min_std),
        "kpad": kpad, "ms_pad": ms_pad, "nh_pad": nh_pad, "d_pad": d_pad,
        "lg_off": lg_off,
    }


def gmm_forward(state_flat, packed, gumbel, eps):
    B, in_dim = state_flat.shape
    M, D = packed["num_modes"], packed["out_dim"]
    kpad, ms_pad = packed["kpad"], packed["ms_pad"]
    nh_pad, d_pad = packed["nh_pad"], packed["d_pad"]
    lg_off = packed["lg_off"]
    bpad = _round_up(B, 8)
    loc = lg_off - (lg_off // 128) * 128
    goff = kpad + d_pad

    # one fused, lane-aligned runtime slab: [ x | eps | gumbel-at-logit-lanes ]
    xn = jnp.zeros((bpad, kpad + d_pad + 128), jnp.float32)
    xn = xn.at[:B, :in_dim].set(state_flat)
    xn = xn.at[:B, kpad:kpad + D].set(eps)
    xn = xn.at[:B, goff + loc:goff + loc + M].set(gumbel)

    pbuf = packed["pbuf"]
    kernel = functools.partial(
        gmm_forward_kernel, num_modes=M, min_std=packed["min_std"],
        kpad=kpad, ms_pad=ms_pad, nh_pad=nh_pad, d_pad=d_pad, lg_off=lg_off)

    vmem = pl.BlockSpec(memory_space=pltpu.MemorySpace.VMEM)
    flops = 2 * bpad * kpad * (2 * kpad + nh_pad) + 2 * bpad * ms_pad * 2 * d_pad
    transcend = bpad * (4 * kpad + 2 * d_pad)
    bytes_acc = int(xn.size * 4 + pbuf.size * 2 + bpad * d_pad * 4)

    out = pl.pallas_call(
        kernel,
        out_shape=jax.ShapeDtypeStruct((bpad, d_pad), jnp.float32),
        in_specs=[vmem, vmem],
        out_specs=vmem,
        cost_estimate=pl.CostEstimate(
            flops=int(flops), transcendentals=int(transcend), bytes_accessed=bytes_acc),
    )(xn, pbuf)
    # TODO(synk): for production batch sizes, add a batch grid over xn/out with
    # dimension_semantics=("parallel",) (v7x megacore split), give pbuf a constant
    # index_map (lambda i: (0, 0)) so params stay VMEM-resident, use 512-1024-row
    # batch tiles on v5e/v6e (128 MiB VMEM) and size tiles for v7x's 64 MiB per-TC
    # VMEM; at B=2 a single program is optimal. deterministic=True branch and
    # loss()/entropy terms of the torch module are not exercised by forward().
    return out[:B, :D]


# ---------------------------------------------------------------------------
# Pure-JAX reference (mirrors the kernel's bf16 weight/bias policy, uses the
# faithful argmax + gather selection of the torch module)
# ---------------------------------------------------------------------------
def reference_forward(state_flat, params, gumbel, eps, *, num_modes, out_dim,
                      min_std=1e-4, mish_fn=_mish_exact):
    bf = lambda a: a.astype(jnp.bfloat16).astype(jnp.float32)
    B = state_flat.shape[0]
    h1 = bf(mish_fn(bf(state_flat) @ bf(params["W1"]) + bf(params["b1"])))
    h2 = bf(mish_fn(h1 @ bf(params["W2"]) + bf(params["b2"])))
    means = (h2 @ bf(params["Wm"]) + bf(params["bm"])).reshape(B, num_modes, out_dim)
    scales = (_softplus(h2 @ bf(params["Ws"]) + bf(params["bs"])) + min_std
              ).reshape(B, num_modes, out_dim)
    logits = h2 @ bf(params["Wl"]) + bf(params["bl"])
    k = jnp.argmax(logits + gumbel, axis=-1)                  # gumbel-max categorical sample
    sel_mean = jnp.take_along_axis(means, k[:, None, None], axis=1)[:, 0]
    sel_scale = jnp.take_along_axis(scales, k[:, None, None], axis=1)[:, 0]
    return sel_mean + sel_scale * eps


def init_params(key, in_dim, hidden, num_modes, out_dim):
    ks = jax.random.split(key, 10)

    def lin(k, fi, fo):
        return jax.random.normal(k, (fi, fo), jnp.float32) / jnp.sqrt(fi)

    def bias(k, fo):
        return 0.05 * jax.random.normal(k, (1, fo), jnp.float32)

    return {
        "W1": lin(ks[0], in_dim, hidden), "b1": bias(ks[5], hidden),
        "W2": lin(ks[1], hidden, hidden), "b2": bias(ks[6], hidden),
        "Wm": lin(ks[2], hidden, num_modes * out_dim), "bm": bias(ks[7], num_modes * out_dim),
        "Ws": lin(ks[3], hidden, num_modes * out_dim), "bs": bias(ks[8], num_modes * out_dim),
        "Wl": lin(ks[4], hidden, num_modes), "bl": bias(ks[9], num_modes),
    }


if __name__ == "__main__":
    # small, forward-consistent shapes
    B = 2            # batch
    cond_steps = 1
    obs_dim = 16
    hidden = 32
    T = 4            # horizon_steps
    A = 3            # action_dim
    M = 5            # number of mixture modes
    D = T * A        # per-component output dim

    key = jax.random.PRNGKey(0)
    k_state, k_param, k_gum, k_eps = jax.random.split(key, 4)

    # cond['state'] : (B, cond_steps, obs_dim); flattened like the MLP network would
    state = jax.random.normal(k_state, (B, cond_steps, obs_dim), jnp.float32)
    state_flat = state.reshape(B, -1)
    in_dim = state_flat.shape[-1]

    params = init_params(k_param, in_dim, hidden, M, D)
    packed = pack_gmm_params(params, in_dim=in_dim, hidden=hidden,
                             num_modes=M, out_dim=D, min_std=1e-4)

    # noise for sampling: gumbel for the categorical, standard normal for the component
    gumbel = jax.random.gumbel(k_gum, (B, M), jnp.float32)
    eps = jax.random.normal(k_eps, (B, D), jnp.float32)

    fwd = jax.jit(lambda s, g, e: gmm_forward(s, packed, g, e))
    action_flat = jax.block_until_ready(fwd(state_flat, gumbel, eps))
    sampled_action = action_flat.reshape(B, T, A)   # matches torch: view(B, T, -1)

    # correctness check against pure-JAX reference (same bf16 weight policy, exact Mish)
    ref = reference_forward(state_flat, params, gumbel, eps,
                            num_modes=M, out_dim=D, min_std=1e-4, mish_fn=_mish_exact)
    ok = bool(jnp.allclose(action_flat, ref, rtol=2e-2, atol=2e-2))
    if not ok:
        # a near-tie in the gumbel-max pick can flip the selected mode between the
        # approx-mish kernel and the exact-mish reference; re-check against the
        # mathematically identical rational-mish reference (matches kernel numerics).
        ref = reference_forward(state_flat, params, gumbel, eps,
                                num_modes=M, out_dim=D, min_std=1e-4,
                                mish_fn=_mish_fast_ref)
        ok = bool(jnp.allclose(action_flat, ref, rtol=2e-2, atol=2e-2))

    assert sampled_action.shape == (B, T, A)
    assert bool(jnp.all(jnp.isfinite(sampled_action)))
    assert ok, float(jnp.max(jnp.abs(action_flat - ref)))

    print("KERNEL_OK")
</pallas_src>

<mosaic_0001>
module attributes {stable_mosaic.version = 11 : i64} {
  func.func @gmm_forward_kernel(%arg0: memref<8x384xf32, #tpu.memory_space<vmem>>, %arg1: memref<264x384xbf16, #tpu.memory_space<vmem>>, %arg2: memref<8x128xf32, #tpu.memory_space<vmem>>) attributes {dimension_semantics = [], scalar_prefetch = 0 : i64, scratch_operands = 0 : i64, tpu.core_type = #tpu.core_type<tc>} {
    %c0 = arith.constant 0 : index
    %c0_0 = arith.constant 0 : index
    %0 = vector.load %arg0[%c0, %c0_0] : memref<8x384xf32, #tpu.memory_space<vmem>>, vector<8x128xf32>
    %1 = arith.truncf %0 : vector<8x128xf32> to vector<8x128xbf16>
    %c0_1 = arith.constant 0 : index
    %c128 = arith.constant 128 : index
    %2 = vector.load %arg0[%c0_1, %c128] : memref<8x384xf32, #tpu.memory_space<vmem>>, vector<8x128xf32>
    %c0_2 = arith.constant 0 : index
    %c256 = arith.constant 256 : index
    %3 = vector.load %arg0[%c0_2, %c256] : memref<8x384xf32, #tpu.memory_space<vmem>>, vector<8x128xf32>
    %c256_3 = arith.constant 256 : index
    %c0_4 = arith.constant 0 : index
    %4 = vector.load %arg1[%c256_3, %c0_4] : memref<264x384xbf16, #tpu.memory_space<vmem>>, vector<1x384xbf16>
    %c257 = arith.constant 257 : index
    %c0_5 = arith.constant 0 : index
    %5 = vector.load %arg1[%c257, %c0_5] : memref<264x384xbf16, #tpu.memory_space<vmem>>, vector<1x128xbf16>
    %6 = arith.extf %5 : vector<1x128xbf16> to vector<1x128xf32>
    %c0_6 = arith.constant 0 : index
    %c0_7 = arith.constant 0 : index
    %7 = vector.load %arg1[%c0_6, %c0_7] : memref<264x384xbf16, #tpu.memory_space<vmem>>, vector<128x128xbf16>
    %cst = arith.constant dense<0.000000e+00> : vector<8x128xf32>
    %8 = tpu.matmul %1, %7, %cst {dimension_numbers = #tpu.dot_dimension_numbers<[1], [0], [0], [1], [0, 0, 1, 1], [], []>} : vector<8x128xbf16>, vector<128x128xbf16>, vector<8x128xf32> -> vector<8x128xf32>
    %9 = vector.extract_strided_slice %4 {offsets = [0, 0], sizes = [1, 128], strides = [1, 1]} : vector<1x384xbf16> to vector<1x128xbf16>
    %10 = arith.extf %9 : vector<1x128xbf16> to vector<1x128xf32>
    %11 = vector.broadcast %10 : vector<1x128xf32> to vector<8x128xf32>
    %12 = arith.addf %8, %11 : vector<8x128xf32>
    %cst_8 = arith.constant 2.000000e+01 : f32
    %13 = vector.broadcast %cst_8 : f32 to vector<8x128xf32>
    %14 = arith.minimumf %12, %13 : vector<8x128xf32>
    %15 = math.exp %14 : vector<8x128xf32>
    %cst_9 = arith.constant 1.000000e+00 : f32
    %16 = vector.broadcast %cst_9 : f32 to vector<8x128xf32>
    %17 = arith.addf %16, %15 : vector<8x128xf32>
    %cst_10 = arith.constant 1.000000e+00 : f32
    %18 = vector.broadcast %cst_10 : f32 to vector<8x128xf32>
    %19 = arith.addf %18, %15 : vector<8x128xf32>
    %20 = arith.mulf %17, %19 : vector<8x128xf32>
    %cst_11 = arith.constant 1.000000e+00 : f32
    %21 = vector.broadcast %cst_11 : f32 to vector<8x128xf32>
    %22 = arith.subf %20, %21 : vector<8x128xf32>
    %23 = arith.mulf %12, %22 : vector<8x128xf32>
    %cst_12 = arith.constant 1.000000e+00 : f32
    %24 = vector.broadcast %cst_12 : f32 to vector<8x128xf32>
    %25 = arith.addf %20, %24 : vector<8x128xf32>
    %26 = tpu.reciprocal %25 {approx = true} : vector<8x128xf32> -> vector<8x128xf32>
    %27 = arith.mulf %23, %26 : vector<8x128xf32>
    %28 = arith.truncf %27 : vector<8x128xf32> to vector<8x128xbf16>
    %c0_13 = arith.constant 0 : index
    %c128_14 = arith.constant 128 : index
    %29 = vector.load %arg1[%c0_13, %c128_14] : memref<264x384xbf16, #tpu.memory_space<vmem>>, vector<128x128xbf16>
    %cst_15 = arith.constant dense<0.000000e+00> : vector<8x128xf32>
    %30 = tpu.matmul %28, %29, %cst_15 {dimension_numbers = #tpu.dot_dimension_numbers<[1], [0], [0], [1], [0, 0, 1, 1], [], []>} : vector<8x128xbf16>, vector<128x128xbf16>, vector<8x128xf32> -> vector<8x128xf32>
    %31 = vector.extract_strided_slice %4 {offsets = [0, 128], sizes = [1, 128], strides = [1, 1]} : vector<1x384xbf16> to vector<1x128xbf16>
    %32 = arith.extf %31 : vector<1x128xbf16> to vector<1x128xf32>
    %33 = vector.broadcast %32 : vector<1x128xf32> to vector<8x128xf32>
    %34 = arith.addf %30, %33 : vector<8x128xf32>
    %cst_16 = arith.constant 2.000000e+01 : f32
    %35 = vector.broadcast %cst_16 : f32 to vector<8x128xf32>
    %36 = arith.minimumf %34, %35 : vector<8x128xf32>
    %37 = math.exp %36 : vector<8x128xf32>
    %cst_17 = arith.constant 1.000000e+00 : f32
    %38 = vector.broadcast %cst_17 : f32 to vector<8x128xf32>
    %39 = arith.addf %38, %37 : vector<8x128xf32>
    %cst_18 = arith.constant 1.000000e+00 : f32
    %40 = vector.broadcast %cst_18 : f32 to vector<8x128xf32>
    %41 = arith.addf %40, %37 : vector<8x128xf32>
    %42 = arith.mulf %39, %41 : vector<8x128xf32>
    %cst_19 = arith.constant 1.000000e+00 : f32
    %43 = vector.broadcast %cst_19 : f32 to vector<8x128xf32>
    %44 = arith.subf %42, %43 : vector<8x128xf32>
    %45 = arith.mulf %34, %44 : vector<8x128xf32>
    %cst_20 = arith.constant 1.000000e+00 : f32
    %46 = vector.broadcast %cst_20 : f32 to vector<8x128xf32>
    %47 = arith.addf %42, %46 : vector<8x128xf32>
    %48 = tpu.reciprocal %47 {approx = true} : vector<8x128xf32> -> vector<8x128xf32>
    %49 = arith.mulf %45, %48 : vector<8x128xf32>
    %50 = arith.truncf %49 : vector<8x128xf32> to vector<8x128xbf16>
    %c0_21 = arith.constant 0 : index
    %c256_22 = arith.constant 256 : index
    %51 = vector.load %arg1[%c0_21, %c256_22] : memref<264x384xbf16, #tpu.memory_space<vmem>>, vector<128x128xbf16>
    %cst_23 = arith.constant dense<0.000000e+00> : vector<8x128xf32>
    %52 = tpu.matmul %50, %51, %cst_23 {dimension_numbers = #tpu.dot_dimension_numbers<[1], [0], [0], [1], [0, 0, 1, 1], [], []>} : vector<8x128xbf16>, vector<128x128xbf16>, vector<8x128xf32> -> vector<8x128xf32>
    %53 = vector.extract_strided_slice %4 {offsets = [0, 256], sizes = [1, 128], strides = [1, 1]} : vector<1x384xbf16> to vector<1x128xbf16>
    %54 = arith.extf %53 : vector<1x128xbf16> to vector<1x128xf32>
    %55 = vector.broadcast %54 : vector<1x128xf32> to vector<8x128xf32>
    %56 = arith.addf %52, %55 : vector<8x128xf32>
    %57 = tpu.iota {dimensions = array<i32: 1>} : vector<8x128xi32>
    %58 = arith.sitofp %57 : vector<8x128xi32> to vector<8x128xf32>
    %cst_24 = arith.constant 1.200000e+02 : f32
    %59 = vector.broadcast %cst_24 : f32 to vector<8x128xf32>
    %60 = arith.cmpf oge, %58, %59 : vector<8x128xf32>
    %cst_25 = arith.constant 1.250000e+02 : f32
    %61 = vector.broadcast %cst_25 : f32 to vector<8x128xf32>
    %62 = arith.cmpf olt, %58, %61 : vector<8x128xf32>
    %63 = arith.andi %60, %62 : vector<8x128xi1>
    %64 = arith.addf %56, %3 : vector<8x128xf32>
    %cst_26 = arith.constant -1.000000e+30 : f32
    %65 = vector.broadcast %cst_26 : f32 to vector<8x128xf32>
    %66 = arith.select %63, %64, %65 : vector<8x128xi1>, vector<8x128xf32>
    %cst_27 = arith.constant dense<0xFF800000> : vector<8xf32>
    %67 = vector.multi_reduction <maximumf>, %66, %cst_27 [1] : vector<8x128xf32> to vector<8xf32>
    %68 = vector.shape_cast %67 : vector<8xf32> to vector<8x1xf32>
    %cst_28 = arith.constant 1.200000e+02 : f32
    %69 = vector.broadcast %cst_28 : f32 to vector<8x128xf32>
    %70 = arith.subf %58, %69 : vector<8x128xf32>
    %cst_29 = arith.constant 5.000000e+00 : f32
    %71 = vector.broadcast %cst_29 : f32 to vector<8x128xf32>
    %72 = arith.select %63, %70, %71 : vector<8x128xi1>, vector<8x128xf32>
    %73 = vector.broadcast %68 : vector<8x1xf32> to vector<8x128xf32>
    %74 = arith.cmpf oge, %66, %73 : vector<8x128xf32>
    %cst_30 = arith.constant 5.000000e+00 : f32
    %75 = vector.broadcast %cst_30 : f32 to vector<8x128xf32>
    %76 = arith.select %74, %72, %75 : vector<8x128xi1>, vector<8x128xf32>
    %cst_31 = arith.constant dense<0x7F800000> : vector<8xf32>
    %77 = vector.multi_reduction <minimumf>, %76, %cst_31 [1] : vector<8x128xf32> to vector<8xf32>
    %78 = vector.shape_cast %77 : vector<8xf32> to vector<8x1xf32>
    %79 = vector.broadcast %6 : vector<1x128xf32> to vector<8x128xf32>
    %80 = vector.broadcast %78 : vector<8x1xf32> to vector<8x128xf32>
    %81 = arith.cmpf oeq, %79, %80 : vector<8x128xf32>
    %82 = arith.extui %81 : vector<8x128xi1> to vector<8x128xi32>
    %83 = arith.sitofp %82 : vector<8x128xi32> to vector<8x128xf32>
    %84 = arith.mulf %83, %56 : vector<8x128xf32>
    %85 = arith.truncf %84 : vector<8x128xf32> to vector<8x128xbf16>
    %c128_32 = arith.constant 128 : index
    %c0_33 = arith.constant 0 : index
    %86 = vector.load %arg1[%c128_32, %c0_33] : memref<264x384xbf16, #tpu.memory_space<vmem>>, vector<128x256xbf16>
    %cst_34 = arith.constant dense<0.000000e+00> : vector<8x256xf32>
    %87 = tpu.matmul %85, %86, %cst_34 {dimension_numbers = #tpu.dot_dimension_numbers<[1], [0], [0], [1], [0, 0, 1, 1], [], []>} : vector<8x128xbf16>, vector<128x256xbf16>, vector<8x256xf32> -> vector<8x256xf32>
    %88 = vector.extract_strided_slice %87 {offsets = [0, 0], sizes = [8, 128], strides = [1, 1]} : vector<8x256xf32> to vector<8x128xf32>
    %89 = vector.extract_strided_slice %87 {offsets = [0, 128], sizes = [8, 128], strides = [1, 1]} : vector<8x256xf32> to vector<8x128xf32>
    %cst_35 = arith.constant 0.000000e+00 : f32
    %90 = vector.broadcast %cst_35 : f32 to vector<8x128xf32>
    %91 = arith.maximumf %89, %90 : vector<8x128xf32>
    %92 = math.absf %89 : vector<8x128xf32>
    %cst_36 = arith.constant 0.000000e+00 : f32
    %93 = vector.broadcast %cst_36 : f32 to vector<8x128xf32>
    %94 = arith.subf %93, %92 : vector<8x128xf32>
    %95 = math.exp %94 : vector<8x128xf32>
    %96 = math.log1p %95 : vector<8x128xf32>
    %97 = arith.addf %91, %96 : vector<8x128xf32>
    %cst_37 = arith.constant 9.99999974E-5 : f32
    %98 = vector.broadcast %cst_37 : f32 to vector<8x128xf32>
    %99 = arith.addf %97, %98 : vector<8x128xf32>
    %100 = arith.mulf %99, %2 : vector<8x128xf32>
    %101 = arith.addf %88, %100 : vector<8x128xf32>
    %c0_38 = arith.constant 0 : index
    %c0_39 = arith.constant 0 : index
    %102 = vector.load %arg2[%c0_38, %c0_39] : memref<8x128xf32, #tpu.memory_space<vmem>>, vector<8x128xf32>
    tpu.vector_store %arg2[%c0_38, %c0_39], %101 {strides = array<i32>} : memref<8x128xf32, #tpu.memory_space<vmem>>, vector<8x128xf32>,
    return
  }
}

</mosaic_0001>

<llo_original>
// kernel: _lambda_.1
$region0: #{_lambda_.1}
  #allocation0 [shape = 'u32[]', space=smem, size = 0x4, offset = 0x4, fixed_abs, tag = 'smem constant byte address 0x4 - core index']
  #allocation1 [shape = 'u32[72,128]{1,0:T(1,128)}', space=vmem, size = 0x9000, scoped, tag = 'internal scratch']
  %s0 = inlined_call_operand.vmem [shape: f32[8,384], index: 0, kind: input, shape index: {}]
  %s1 = inlined_call_operand.hbm [shape: bf16[264,384], index: 1, kind: input, shape index: {}]
  %s2 = inlined_call_operand.vmem [shape: f32[8,128], index: 2, kind: output, shape index: {}]
  %s3 = sld [smem:[#allocation0]]
  $region22: #{_lambda_.1} parent=0
    _
  %s5 = ssub.s32 1, %s3
  %s6 = scalar_select 0, %s5, %s3
  $region1: #{_lambda_.1} parent=0
    #allocation2 [shape = 'u8[202752]{0}', space=vmem, size = 0x31800, scoped, tag = 'input window, operand 1, single buffered']
    #allocation3 [shape = 's32[1]{0}', space=sflag, size = 0x4, scoped, tag = 'scoped memory for _lambda_.1']
    %7 = vsyncpa [#allocation3], 0
    // Predicated region
    $region2: #{_lambda_.1} parent=1 // pred_check
      _
    $region3: #{_lambda_.1} parent=1 // pred_check_branch
      %9 = sbr.rel (0) target = $region5
    $region4: #{_lambda_.1} parent=1 // pred_region
      _
    $region5: #{_lambda_.1} parent=1 // pred_fallthru
      _
    // Predicated region
    $region6: #{_lambda_.1} parent=1 // pred_check
      _
    $region7: #{_lambda_.1} parent=1 // pred_check_branch
      %11 = sbr.rel (0) target = $region9
    $region8: #{_lambda_.1} parent=1 // pred_region
      %13 = vsyncadd [#allocation3], 0
      %s14 = sshll.u32 %s1, 4
      %s15 = int_to_ptr.hbm [resolvable:$true] %s14
      %s16 = sshll.u32 [#allocation2], 4
      %s17 = int_to_ptr.vmem [resolvable:$true] %s16
      %22 = dma.hbm_to_vmem [thread:$0]  %s15, 6336, %s17, [#allocation3], 192, 192, 12
    $region9: #{_lambda_.1} parent=1 // pred_fallthru
      _
    // Predicated region
    $region10: #{_lambda_.1} parent=1 // pred_check
      _
    $region11: #{_lambda_.1} parent=1 // pred_check_branch
      %24 = sbr.rel (0) target = $region13
    $region12: #{_lambda_.1} parent=1 // pred_region
      %26 = dma.done [#allocation3], 6336
    $region13: #{_lambda_.1} parent=1 // pred_fallthru
      _
    %v27 = vld [vmem:[%s0] sm:$0xff]
    %v28 = vpack.c.bf16 %v27, %v27
    %v29 = vld [vmem:[%s0 + $0x8] sm:$0xff]
    %v30 = vld [vmem:[%s0 + $0x10] sm:$0xff]
    %v31 = vld [vmem:[#allocation2 + $0x180] sm:$0x11]
    %v32 = vld [vmem:[#allocation2 + $0x188] sm:$0x1]
    %v33 = vld [vmem:[#allocation2 + $0x180] sm:$0x1]
    %v34 = vunpack.c.l.bf16 %v33
    %v35 = vld [vmem:[#allocation2] sm:$0xf]
    %v36 = vld [vmem:[#allocation2 + $0xc] sm:$0xf]
    %v37 = vld [vmem:[#allocation2 + $0x18] sm:$0xf]
    %v38 = vld [vmem:[#allocation2 + $0x24] sm:$0xf]
    %v39 = vld [vmem:[#allocation2 + $0x30] sm:$0xf]
    %v40 = vld [vmem:[#allocation2 + $0x3c] sm:$0xf]
    %v41 = vld [vmem:[#allocation2 + $0x48] sm:$0xf]
    %v42 = vld [vmem:[#allocation2 + $0x54] sm:$0xf]
    %v43 = vld [vmem:[#allocation2 + $0x60] sm:$0xf]
    %v44 = vld [vmem:[#allocation2 + $0x6c] sm:$0xf]
    %v45 = vld [vmem:[#allocation2 + $0x78] sm:$0xf]
    %v46 = vld [vmem:[#allocation2 + $0x84] sm:$0xf]
    %v47 = vld [vmem:[#allocation2 + $0x90] sm:$0xf]
    %v48 = vld [vmem:[#allocation2 + $0x9c] sm:$0xf]
    %v49 = vld [vmem:[#allocation2 + $0xa8] sm:$0xf]
    %v50 = vld [vmem:[#allocation2 + $0xb4] sm:$0xf]
    %v51 = vunpack.c.l.bf16 %v31
    %v52 = vperm.slane %v51, 0
    %v69 = vunpack.c.l.b16 %v35
    %v70 = vunpack.c.l.b16 %v36
    %v71 = vunpack.c.l.b16 %v37
    %v72 = vunpack.c.l.b16 %v38
    %v73 = vunpack.c.l.b16 %v39
    %v74 = vunpack.c.l.b16 %v40
    %v75 = vunpack.c.l.b16 %v41
    %v76 = vunpack.c.l.b16 %v42
    %v77 = vunpack.c.l.b16 %v43
    %v78 = vunpack.c.l.b16 %v44
    %v79 = vunpack.c.l.b16 %v45
    %v80 = vunpack.c.l.b16 %v46
    %v81 = vunpack.c.l.b16 %v47
    %v82 = vunpack.c.l.b16 %v48
    %v83 = vunpack.c.l.b16 %v49
    %v84 = vunpack.c.l.b16 %v50
    %v85 = vpack.c.b16 %v70, %v69
    %v86 = vpack.c.b16 %v72, %v71
    %v87 = vpack.c.b16 %v74, %v73
    %v88 = vpack.c.b16 %v76, %v75
    %v89 = vpack.c.b16 %v78, %v77
    %v90 = vpack.c.b16 %v80, %v79
    %v91 = vpack.c.b16 %v82, %v81
    %v92 = vpack.c.b16 %v84, %v83
    %101 = vmatpush.bf16.msra.mxu0 %v92
    %102 = vmatpush.bf16.msra.mxu0 %v91
    %103 = vmatpush.bf16.msra.mxu0 %v90
    %104 = vmatpush.bf16.msra.mxu0 %v89
    %105 = vmatpush.bf16.msra.mxu0 %v88
    %106 = vmatpush.bf16.msra.mxu0 %v87
    %107 = vmatpush.bf16.msra.mxu0 %v86
    %108 = vmatpush.bf16.msra.mxu0 %v85
    %109 = vmatmul.bf16.gmra.mxu0 %v28
    %v110 = vpop.f32.mrf.mxu0
    %v111 = vadd.f32 %v52, %v110
    %v112 = vpop.f32.mrf.mxu0
    %113 = vdwg.mxu0
    %v114 = vmin.f32 %v111, 20.0
    %v115 = vmul.f32 %v114, 1.442695
    %v116 = vpow.pop %v115
    %v117 = vadd.f32 %v116, 1.0
    %v118 = vmul.f32 %v117, %v117
    %v119 = vsub.f32 %v118, 1.0
    %v120 = vmul.f32 %v111, %v119
    %v121 = vadd.f32 %v118, 1.0
    %v122 = vrcp.pop %v121
    %v123 = vmul.f32 %v120, %v122
    %v124 = vpack.c.bf16 %v123, %v123
    %v125 = vld [vmem:[#allocation2 + $0x4] sm:$0xf]
    %v126 = vld [vmem:[#allocation2 + $0x10] sm:$0xf]
    %v127 = vld [vmem:[#allocation2 + $0x1c] sm:$0xf]
    %v128 = vld [vmem:[#allocation2 + $0x28] sm:$0xf]
    %v129 = vld [vmem:[#allocation2 + $0x34] sm:$0xf]
    %v130 = vld [vmem:[#allocation2 + $0x40] sm:$0xf]
    %v131 = vld [vmem:[#allocation2 + $0x4c] sm:$0xf]
    %v132 = vld [vmem:[#allocation2 + $0x58] sm:$0xf]
    %v133 = vld [vmem:[#allocation2 + $0x64] sm:$0xf]
    %v134 = vld [vmem:[#allocation2 + $0x70] sm:$0xf]
    %v135 = vld [vmem:[#allocation2 + $0x7c] sm:$0xf]
    %v136 = vld [vmem:[#allocation2 + $0x88] sm:$0xf]
    %v137 = vld [vmem:[#allocation2 + $0x94] sm:$0xf]
    %v138 = vld [vmem:[#allocation2 + $0xa0] sm:$0xf]
    %v139 = vld [vmem:[#allocation2 + $0xac] sm:$0xf]
    %v140 = vld [vmem:[#allocation2 + $0xb8] sm:$0xf]
    %v142 = vrot.slane %v31, 4
    %v144 = vunpack.c.l.bf16 %v142
    %v145 = vperm.slane %v144, 0
    %v162 = vunpack.c.l.b16 %v125
    %v163 = vunpack.c.l.b16 %v126
    %v164 = vunpack.c.l.b16 %v127
    %v165 = vunpack.c.l.b16 %v128
    %v166 = vunpack.c.l.b16 %v129
    %v167 = vunpack.c.l.b16 %v130
    %v168 = vunpack.c.l.b16 %v131
    %v169 = vunpack.c.l.b16 %v132
    %v170 = vunpack.c.l.b16 %v133
    %v171 = vunpack.c.l.b16 %v134
    %v172 = vunpack.c.l.b16 %v135
    %v173 = vunpack.c.l.b16 %v136
    %v174 = vunpack.c.l.b16 %v137
    %v175 = vunpack.c.l.b16 %v138
    %v176 = vunpack.c.l.b16 %v139
    %v177 = vunpack.c.l.b16 %v140
    %v178 = vpack.c.b16 %v163, %v162
    %v179 = vpack.c.b16 %v165, %v164
    %v180 = vpack.c.b16 %v167, %v166
    %v181 = vpack.c.b16 %v169, %v168
    %v182 = vpack.c.b16 %v171, %v170
    %v183 = vpack.c.b16 %v173, %v172
    %v184 = vpack.c.b16 %v175, %v174
    %v185 = vpack.c.b16 %v177, %v176
    %194 = vmatpush.bf16.msra.mxu0 %v185
    %195 = vmatpush.bf16.msra.mxu0 %v184
    %196 = vmatpush.bf16.msra.mxu0 %v183
    %197 = vmatpush.bf16.msra.mxu0 %v182
    %198 = vmatpush.bf16.msra.mxu0 %v181
    %199 = vmatpush.bf16.msra.mxu0 %v180
    %200 = vmatpush.bf16.msra.mxu0 %v179
    %201 = vmatpush.bf16.msra.mxu0 %v178
    %202 = vmatmul.bf16.gmra.mxu0 %v124
    %v203 = vpop.f32.mrf.mxu0
    %v204 = vadd.f32 %v145, %v203
    %v205 = vpop.f32.mrf.mxu0
    %206 = vdwg.mxu0
    %v207 = vmin.f32 %v204, 20.0
    %v208 = vmul.f32 %v207, 1.442695
    %v209 = vpow.pop %v208
    %v210 = vadd.f32 %v209, 1.0
    %v211 = vmul.f32 %v210, %v210
    %v212 = vsub.f32 %v211, 1.0
    %v213 = vmul.f32 %v204, %v212
    %v214 = vadd.f32 %v211, 1.0
    %v215 = vrcp.pop %v214
    %v216 = vmul.f32 %v213, %v215
    %v217 = vpack.c.bf16 %v216, %v216
    %v218 = vld [vmem:[#allocation2 + $0x8] sm:$0xf]
    %v219 = vld [vmem:[#allocation2 + $0x14] sm:$0xf]
    %v220 = vld [vmem:[#allocation2 + $0x20] sm:$0xf]
    %v221 = vld [vmem:[#allocation2 + $0x2c] sm:$0xf]
    %v222 = vld [vmem:[#allocation2 + $0x38] sm:$0xf]
    %v223 = vld [vmem:[#allocation2 + $0x44] sm:$0xf]
    %v224 = vld [vmem:[#allocation2 + $0x50] sm:$0xf]
    %v225 = vld [vmem:[#allocation2 + $0x5c] sm:$0xf]
    %v226 = vld [vmem:[#allocation2 + $0x68] sm:$0xf]
    %v227 = vld [vmem:[#allocation2 + $0x74] sm:$0xf]
    %v228 = vld [vmem:[#allocation2 + $0x80] sm:$0xf]
    %v229 = vld [vmem:[#allocation2 + $0x8c] sm:$0xf]
    %v230 = vld [vmem:[#allocation2 + $0x98] sm:$0xf]
    %v231 = vld [vmem:[#allocation2 + $0xa4] sm:$0xf]
    %v232 = vld [vmem:[#allocation2 + $0xb0] sm:$0xf]
    %v233 = vld [vmem:[#allocation2 + $0xbc] sm:$0xf]
    %v234 = vunpack.c.l.bf16 %v32
    %v235 = vperm.slane %v234, 0
    %v252 = vunpack.c.l.b16 %v218
    %v253 = vunpack.c.l.b16 %v219
    %v254 = vunpack.c.l.b16 %v220
    %v255 = vunpack.c.l.b16 %v221
    %v256 = vunpack.c.l.b16 %v222
    %v257 = vunpack.c.l.b16 %v223
    %v258 = vunpack.c.l.b16 %v224
    %v259 = vunpack.c.l.b16 %v225
    %v260 = vunpack.c.l.b16 %v226
    %v261 = vunpack.c.l.b16 %v227
    %v262 = vunpack.c.l.b16 %v228
    %v263 = vunpack.c.l.b16 %v229
    %v264 = vunpack.c.l.b16 %v230
    %v265 = vunpack.c.l.b16 %v231
    %v266 = vunpack.c.l.b16 %v232
    %v267 = vunpack.c.l.b16 %v233
    %v268 = vpack.c.b16 %v253, %v252
    %v269 = vpack.c.b16 %v255, %v254
    %v270 = vpack.c.b16 %v257, %v256
    %v271 = vpack.c.b16 %v259, %v258
    %v272 = vpack.c.b16 %v261, %v260
    %v273 = vpack.c.b16 %v263, %v262
    %v274 = vpack.c.b16 %v265, %v264
    %v275 = vpack.c.b16 %v267, %v266
    %284 = vmatpush.bf16.msra.mxu0 %v275
    %285 = vmatpush.bf16.msra.mxu0 %v274
    %286 = vmatpush.bf16.msra.mxu0 %v273
    %287 = vmatpush.bf16.msra.mxu0 %v272
    %288 = vmatpush.bf16.msra.mxu0 %v271
    %289 = vmatpush.bf16.msra.mxu0 %v270
    %290 = vmatpush.bf16.msra.mxu0 %v269
    %291 = vmatpush.bf16.msra.mxu0 %v268
    %292 = vmatmul.bf16.gmra.mxu0 %v217
    %v293 = vpop.f32.mrf.mxu0
    %v294 = vadd.f32 %v235, %v293
    %v295 = vpop.f32.mrf.mxu0
    %296 = vdwg.mxu0
    %v297 = vlaneseq
    %v298 = vand.u32 %v297, 127
    %v299 = vcvt.s32.f32 %v298
    %vm300 = vcmp.ge.f32.partialorder %v299, 120.0
    %vm301 = vcmp.lt.f32.partialorder %v299, 125.0
    %vm302 = vmand %vm300, %vm301
    %v303 = vadd.f32 %v294, %v30
    %v304 = vsel %vm302, %v303, -1e+30
    %305 = vmax.xlane.f32.xlu0 %v304
    %v306 = vpop.xlane.xlu0 %305
    %v307 = vsub.f32 %v299, 120.0
    %v308 = vsel %vm302, %v307, 5.0
    %vm309 = vcmp.ge.f32.partialorder %v304, %v306
    %v310 = vsel %vm309, %v308, 5.0
    %311 = vmin.xlane.f32.xlu0 %v310
    %v312 = vpop.xlane.xlu0 %311
    %v313 = vperm.slane %v34, 1
    %vm314 = vcmp.eq.f32.partialorder %v313, %v312
    %v315 = vsel %vm314, 1, 0
    %v316 = vcvt.s32.f32 %v315
    %v317 = vmul.f32 %v316, %v294
    %v318 = vpack.c.bf16 %v317, %v317
    %v319 = vld [vmem:[#allocation2 + $0xc0] sm:$0xff]
    %v320 = vld [vmem:[#allocation2 + $0xcc] sm:$0xff]
    %v321 = vld [vmem:[#allocation2 + $0xd8] sm:$0xff]
    %v322 = vld [vmem:[#allocation2 + $0xe4] sm:$0xff]
    %v323 = vld [vmem:[#allocation2 + $0xf0] sm:$0xff]
    %v324 = vld [vmem:[#allocation2 + $0xfc] sm:$0xff]
    %v325 = vld [vmem:[#allocation2 + $0x108] sm:$0xff]
    %v326 = vld [vmem:[#allocation2 + $0x114] sm:$0xff]
    %v327 = vld [vmem:[#allocation2 + $0x120] sm:$0xff]
    %v328 = vld [vmem:[#allocation2 + $0x12c] sm:$0xff]
    %v329 = vld [vmem:[#allocation2 + $0x138] sm:$0xff]
    %v330 = vld [vmem:[#allocation2 + $0x144] sm:$0xff]
    %v331 = vld [vmem:[#allocation2 + $0x150] sm:$0xff]
    %v332 = vld [vmem:[#allocation2 + $0x15c] sm:$0xff]
    %v333 = vld [vmem:[#allocation2 + $0x168] sm:$0xff]
    %v334 = vld [vmem:[#allocation2 + $0x174] sm:$0xff]
    %v351 = vunpack.c.l.b16 %v319
    %v352 = vunpack.c.h.b16 %v319
    %v353 = vunpack.c.l.b16 %v320
    %v354 = vunpack.c.h.b16 %v320
    %v355 = vunpack.c.l.b16 %v321
    %v356 = vunpack.c.h.b16 %v321
    %v357 = vunpack.c.l.b16 %v322
    %v358 = vunpack.c.h.b16 %v322
    %v359 = vunpack.c.l.b16 %v323
    %v360 = vunpack.c.h.b16 %v323
    %v361 = vunpack.c.l.b16 %v324
    %v362 = vunpack.c.h.b16 %v324
    %v363 = vunpack.c.l.b16 %v325
    %v364 = vunpack.c.h.b16 %v325
    %v365 = vunpack.c.l.b16 %v326
    %v366 = vunpack.c.h.b16 %v326
    %v367 = vunpack.c.l.b16 %v327
    %v368 = vunpack.c.h.b16 %v327
    %v369 = vunpack.c.l.b16 %v328
    %v370 = vunpack.c.h.b16 %v328
    %v371 = vunpack.c.l.b16 %v329
    %v372 = vunpack.c.h.b16 %v329
    %v373 = vunpack.c.l.b16 %v330
    %v374 = vunpack.c.h.b16 %v330
    %v375 = vunpack.c.l.b16 %v331
    %v376 = vunpack.c.h.b16 %v331
    %v377 = vunpack.c.l.b16 %v332
    %v378 = vunpack.c.h.b16 %v332
    %v379 = vunpack.c.l.b16 %v333
    %v380 = vunpack.c.h.b16 %v333
    %v381 = vunpack.c.l.b16 %v334
    %v382 = vunpack.c.h.b16 %v334
    %v383 = vpack.c.b16 %v353, %v351
    %v384 = vpack.c.b16 %v354, %v352
    %v385 = vpack.c.b16 %v357, %v355
    %v386 = vpack.c.b16 %v358, %v356
    %v387 = vpack.c.b16 %v361, %v359
    %v388 = vpack.c.b16 %v362, %v360
    %v389 = vpack.c.b16 %v365, %v363
    %v390 = vpack.c.b16 %v366, %v364
    %v391 = vpack.c.b16 %v369, %v367
    %v392 = vpack.c.b16 %v370, %v368
    %v393 = vpack.c.b16 %v373, %v371
    %v394 = vpack.c.b16 %v374, %v372
    %v395 = vpack.c.b16 %v377, %v375
    %v396 = vpack.c.b16 %v378, %v376
    %v397 = vpack.c.b16 %v381, %v379
    %v398 = vpack.c.b16 %v382, %v380
    %415 = vmatpush.bf16.msra.mxu0 %v397
    %416 = vmatpush.bf16.msra.mxu0 %v395
    %417 = vmatpush.bf16.msra.mxu0 %v393
    %418 = vmatpush.bf16.msra.mxu0 %v391
    %419 = vmatpush.bf16.msra.mxu0 %v389
    %420 = vmatpush.bf16.msra.mxu0 %v387
    %421 = vmatpush.bf16.msra.mxu0 %v385
    %422 = vmatpush.bf16.msra.mxu0 %v383
    %423 = vmatmul.bf16.gmra.mxu0 %v318
    %v424 = vpop.f32.mrf.mxu0
    %v425 = vadd.f32 0.0, %v424
    %v426 = vpop.f32.mrf.mxu0
    %427 = vdwg.mxu0
    %428 = vmatpush.bf16.msra.mxu0 %v398
    %429 = vmatpush.bf16.msra.mxu0 %v396
    %430 = vmatpush.bf16.msra.mxu0 %v394
    %431 = vmatpush.bf16.msra.mxu0 %v392
    %432 = vmatpush.bf16.msra.mxu0 %v390
    %433 = vmatpush.bf16.msra.mxu0 %v388
    %434 = vmatpush.bf16.msra.mxu0 %v386
    %435 = vmatpush.bf16.msra.mxu0 %v384
    %436 = vmatmul.bf16.gmra.mxu0 %v318
    %v437 = vpop.f32.mrf.mxu0
    %v438 = vadd.f32 0.0, %v437
    %v439 = vpop.f32.mrf.mxu0
    %440 = vdwg.mxu0
    %v441 = vmax.f32 %v438, 0.0
    %v442 = vand.u32 2147483647, %v438
    %v443 = vsub.f32 0.0, %v442
    %v444 = vmul.f32 %v443, 1.442695
    %v445 = vpow.pop %v444
    %v446 = vadd.f32 %v445, 1.0
    %v447 = vlog2.pop %v446
    %v448 = vmul.f32 %v447, 0.6931472
    %v449 = vmul.f32 -0.5, %v445
    %v450 = vadd.f32 %v449, 1.0
    %v451 = vmul.f32 %v450, %v445
    %v452 = vand.u32 2147483647, %v445
    %vm453 = vcmp.lt.f32.partialorder %v452, 0.0004427343
    %v454 = vsel %vm453, %v451, %v448
    %v455 = vadd.f32 %v441, %v454
    %v456 = vadd.f32 %v455, 0.0001
    %v457 = vmul.f32 %v456, %v29
    %v458 = vadd.f32 %v425, %v457
    %459 = vst [vmem:[%s2] sm:$0xff] %v458
    // Predicated region
    $region14: #{_lambda_.1} parent=1 // pred_check
      _
    $region15: #{_lambda_.1} parent=1 // pred_check_branch
      %461 = sbr.rel (0) target = $region17
    $region16: #{_lambda_.1} parent=1 // pred_region
      _
    $region17: #{_lambda_.1} parent=1 // pred_fallthru
      _
    // Predicated region
    $region18: #{_lambda_.1} parent=1 // pred_check
      _
    $region19: #{_lambda_.1} parent=1 // pred_check_branch
      %463 = sbr.rel (0) target = $region21
    $region20: #{_lambda_.1} parent=1 // pred_region
      _
    $region21: #{_lambda_.1} parent=1 // pred_fallthru
      _
    %464 = vsyncpa [#allocation3], 1

</llo_original>
